<compile_context>
chip_gen: v5e
topology: v5e:2x2
jax: 0.10.0
libtpu: 0.0.40
codegen_flags: <defaults>
</compile_context>

<pallas_src>
import jax
import jax.numpy as jnp
from jax.experimental import pallas as pl
from jax.experimental.pallas import tpu as pltpu


def _round_up(x: int, m: int) -> int:
    return ((x + m - 1) // m) * m


def _vmem_capacity_bytes() -> int:
    try:
        return int(getattr(pltpu.get_tpu_info(), "vmem_capacity_bytes", 64 << 20))
    except Exception:
        return 64 << 20  # conservative fallback = v7x per-TensorCore VMEM


def _pick_batch_tile(b: int, d: int, itemsize: int) -> int:
    """Batch tile TB: multiple of 8 (128 when large), nine double-buffered input
    streams within ~1/4 of VMEM, and small enough to keep >= ~8 grid steps when
    the batch allows it (so both v7x TensorCores get a pipelined stream)."""
    budget = _vmem_capacity_bytes() // 4
    tb = budget // (2 * 9 * d * itemsize)          # 2 = double buffering
    tb = max(8, (tb // 8) * 8)
    tb = min(tb, 4096)                             # ~0.35us/step overhead is <<1% here
    b8 = _round_up(max(int(b), 1), 8)
    tb = min(tb, max(8, _round_up(pl.cdiv(b8, 8), 8)))   # aim for >= ~8 tiles
    tb = min(tb, b8)
    if tb >= 128:
        tb = (tb // 128) * 128                     # lane-dense output rows
    return int(tb)


def _trivec_score_kernel(h1, h2, h3, t1, t2, t3, r1, r2, r3, out_ref):
    # Input tiles: [TB, D] (any float dtype).  Compute in f32.
    f32 = jnp.float32
    p = (h1[...].astype(f32) * r1[...].astype(f32) * t3[...].astype(f32)
         + h2[...].astype(f32) * r2[...].astype(f32) * t2[...].astype(f32)
         + h3[...].astype(f32) * r3[...].astype(f32) * t1[...].astype(f32))
    # Reduce over D on the (idle) MXU: ones(1,D) contracted with p(TB,D) over D
    # yields a (1, TB) row that is already lane-dense (no cross-lane relayout).
    ones = jnp.ones((1, p.shape[1]), f32)
    row = jax.lax.dot_general(
        ones, p, (((1,), (1,)), ((), ())),
        preferred_element_type=f32, precision=jax.lax.Precision.HIGHEST)
    out_ref[0] = row                               # out_ref block: [1, 1, TB]


def trivec_score(h_1, h_2, h_3, t_1, t_2, t_3, r_1, r_2, r_3, *, batch_tile=None):
    """Fused triple-product + embedding-dim reduction.
    Inputs: nine [B, D] slabs (same float dtype).  Returns [B] float32 scores."""
    slabs = (h_1, h_2, h_3, t_1, t_2, t_3, r_1, r_2, r_3)
    b, d = h_1.shape
    itemsize = jnp.dtype(h_1.dtype).itemsize
    vmem_cap = _vmem_capacity_bytes()

    if batch_tile is None:
        tb = _pick_batch_tile(b, d, itemsize)
    else:
        # Validate explicit overrides: sublane-align and clamp so the
        # double-buffered footprint stays within ~1/2 of this chip's VMEM.
        tb = _round_up(max(int(batch_tile), 8), 8)
        max_tb = max(8, ((vmem_cap // 2) // (2 * 9 * d * itemsize) // 8) * 8)
        tb = min(tb, max_tb)

    b_pad = _round_up(b, tb)
    if b_pad != b:
        # Fallback for callers that did not pre-pad.  The module pads the cheap
        # int32 index vectors before the gather instead, so this is normally skipped.
        slabs = tuple(jnp.pad(s, ((0, b_pad - b), (0, 0))) for s in slabs)

    num_tiles = b_pad // tb

    in_bytes = 2 * 9 * tb * d * itemsize           # double-buffered nine inputs
    out_bytes = 2 * tb * 4
    vmem_limit = int((in_bytes + out_bytes) * 1.25) + (2 << 20)
    vmem_limit = max(vmem_limit, 32 << 20)
    vmem_limit = min(vmem_limit, vmem_cap - (4 << 20))

    out = pl.pallas_call(
        _trivec_score_kernel,
        out_shape=jax.ShapeDtypeStruct((num_tiles, 1, tb), jnp.float32),
        grid=(num_tiles,),
        in_specs=[pl.BlockSpec((tb, d), lambda i: (i, 0)) for _ in range(9)],
        out_specs=pl.BlockSpec((1, 1, tb), lambda i: (i, 0, 0)),
        compiler_params=pltpu.CompilerParams(
            dimension_semantics=("parallel",),
            vmem_limit_bytes=vmem_limit,
        ),
    )(*slabs)
    return out.reshape(-1)[:b]


class TriVecPallas:
    """JAX/Pallas port of the TriVec module (forward / get_score)."""

    def __init__(self, ent_total: int, rel_total: int, dim: int, key,
                 emb_dtype=jnp.bfloat16):
        self.dim = int(dim)
        self.ent_total = int(ent_total)
        self.rel_total = int(rel_total)
        self.regularization_const = 0.03
        # Tables stored narrow (bf16 by default) so the gather writes and the
        # kernel reads half the bytes; all math is f32 inside the kernel.
        # Pass emb_dtype=jnp.float32 to keep exact f32 storage semantics.
        self.emb_dtype = emb_dtype
        ks = jax.random.split(key, 6)
        init = lambda k, n: (jax.random.normal(k, (n, self.dim), jnp.float32)
                             * 0.1).astype(emb_dtype)
        self.ent_1 = init(ks[0], self.ent_total)
        self.ent_2 = init(ks[1], self.ent_total)
        self.ent_3 = init(ks[2], self.ent_total)
        self.rel_1 = init(ks[3], self.rel_total)
        self.rel_2 = init(ks[4], self.rel_total)
        self.rel_3 = init(ks[5], self.rel_total)

    def _get_emb(self, h_idx, t_idx, r_idx):
        return (self.ent_1[h_idx], self.ent_2[h_idx], self.ent_3[h_idx],
                self.ent_1[t_idx], self.ent_2[t_idx], self.ent_3[t_idx],
                self.rel_1[r_idx], self.rel_2[r_idx], self.rel_3[r_idx])

    def get_score(self, h_idx, t_idx, r_idx):
        b = h_idx.shape[0]
        tb = _pick_batch_tile(b, self.dim, jnp.dtype(self.emb_dtype).itemsize)
        b_pad = _round_up(b, tb)
        if b_pad != b:
            # Pad the cheap int32 index vectors (index 0 is always valid) so the
            # gather emits tile-aligned slabs — no float-array pad pass needed.
            pad = ((0, b_pad - b),)
            h_idx = jnp.pad(h_idx, pad)
            t_idx = jnp.pad(t_idx, pad)
            r_idx = jnp.pad(r_idx, pad)
        embs = self._get_emb(h_idx, t_idx, r_idx)
        return trivec_score(*embs, batch_tile=tb)[:b]

    @staticmethod
    def _get_indexes_from_data(data):
        return data[:, 0], data[:, 2], data[:, 1]

    def forward(self, data):
        h_idx, t_idx, r_idx = self._get_indexes_from_data(data)
        return self.get_score(h_idx, t_idx, r_idx)

    def regularization(self, data):
        # Plain JAX (tiny, not perf-critical).
        h_idx, t_idx, r_idx = self._get_indexes_from_data(data)
        embs = self._get_emb(h_idx, t_idx, r_idx)
        reg = sum(jnp.mean(jnp.abs(e.astype(jnp.float32)) ** 3, axis=1) for e in embs)
        return self.regularization_const * reg / 3.0

    def forward_ref(self, data):
        # Pure-JAX reference (same stored tables, f32 math) for verification.
        h_idx, t_idx, r_idx = self._get_indexes_from_data(data)
        h1, h2, h3, t1, t2, t3, r1, r2, r3 = (
            e.astype(jnp.float32) for e in self._get_emb(h_idx, t_idx, r_idx))
        return (h1 * r1 * t3 + h2 * r2 * t2 + h3 * r3 * t1).sum(axis=1)


if __name__ == "__main__":
    key = jax.random.PRNGKey(0)
    k_model, k_h, k_r, k_t = jax.random.split(key, 4)

    ent_total, rel_total, dim = 16, 4, 128
    batch = 8

    model = TriVecPallas(ent_total, rel_total, dim, k_model)

    h_idx = jax.random.randint(k_h, (batch,), 0, ent_total, dtype=jnp.int32)
    r_idx = jax.random.randint(k_r, (batch,), 0, rel_total, dtype=jnp.int32)
    t_idx = jax.random.randint(k_t, (batch,), 0, ent_total, dtype=jnp.int32)
    data = jnp.stack([h_idx, r_idx, t_idx], axis=1)  # [B, 3] like the torch module

    # jit so the wrapper-side gather and the Pallas kernel live in one program.
    fwd = jax.jit(model.forward)
    score = jax.block_until_ready(fwd(data))

    score_ref = model.forward_ref(data)
    assert score.shape == (batch,)
    assert jnp.allclose(score, score_ref, atol=1e-3, rtol=1e-3), (score, score_ref)

    print("KERNEL_OK")
</pallas_src>

<mosaic_0001>
module attributes {stable_mosaic.version = 11 : i64} {
  func.func @_trivec_score_kernel(%arg0: i32, %arg1: memref<8x128xbf16, #tpu.memory_space<vmem>>, %arg2: memref<8x128xbf16, #tpu.memory_space<vmem>>, %arg3: memref<8x128xbf16, #tpu.memory_space<vmem>>, %arg4: memref<8x128xbf16, #tpu.memory_space<vmem>>, %arg5: memref<8x128xbf16, #tpu.memory_space<vmem>>, %arg6: memref<8x128xbf16, #tpu.memory_space<vmem>>, %arg7: memref<8x128xbf16, #tpu.memory_space<vmem>>, %arg8: memref<8x128xbf16, #tpu.memory_space<vmem>>, %arg9: memref<8x128xbf16, #tpu.memory_space<vmem>>, %arg10: memref<1x1x8xf32, #tpu.memory_space<vmem>>) attributes {dimension_semantics = [#tpu.dimension_semantics<parallel>], iteration_bounds = array<i64: 1>, scalar_prefetch = 0 : i64, scratch_operands = 0 : i64, tpu.core_type = #tpu.core_type<tc>, window_params = [{transform_indices = @transform_0, window_bounds = array<i64: 8, 128>}, {transform_indices = @transform_1, window_bounds = array<i64: 8, 128>}, {transform_indices = @transform_2, window_bounds = array<i64: 8, 128>}, {transform_indices = @transform_3, window_bounds = array<i64: 8, 128>}, {transform_indices = @transform_4, window_bounds = array<i64: 8, 128>}, {transform_indices = @transform_5, window_bounds = array<i64: 8, 128>}, {transform_indices = @transform_6, window_bounds = array<i64: 8, 128>}, {transform_indices = @transform_7, window_bounds = array<i64: 8, 128>}, {transform_indices = @transform_8, window_bounds = array<i64: 8, 128>}, {transform_indices = @transform_9, window_bounds = array<i64: 1, 1, 8>}]} {
    %c0 = arith.constant 0 : index
    %c0_0 = arith.constant 0 : index
    %0 = vector.load %arg1[%c0, %c0_0] : memref<8x128xbf16, #tpu.memory_space<vmem>>, vector<8x128xbf16>
    %1 = arith.extf %0 : vector<8x128xbf16> to vector<8x128xf32>
    %c0_1 = arith.constant 0 : index
    %c0_2 = arith.constant 0 : index
    %2 = vector.load %arg7[%c0_1, %c0_2] : memref<8x128xbf16, #tpu.memory_space<vmem>>, vector<8x128xbf16>
    %3 = arith.extf %2 : vector<8x128xbf16> to vector<8x128xf32>
    %4 = arith.mulf %1, %3 : vector<8x128xf32>
    %c0_3 = arith.constant 0 : index
    %c0_4 = arith.constant 0 : index
    %5 = vector.load %arg6[%c0_3, %c0_4] : memref<8x128xbf16, #tpu.memory_space<vmem>>, vector<8x128xbf16>
    %6 = arith.extf %5 : vector<8x128xbf16> to vector<8x128xf32>
    %7 = arith.mulf %4, %6 : vector<8x128xf32>
    %c0_5 = arith.constant 0 : index
    %c0_6 = arith.constant 0 : index
    %8 = vector.load %arg2[%c0_5, %c0_6] : memref<8x128xbf16, #tpu.memory_space<vmem>>, vector<8x128xbf16>
    %9 = arith.extf %8 : vector<8x128xbf16> to vector<8x128xf32>
    %c0_7 = arith.constant 0 : index
    %c0_8 = arith.constant 0 : index
    %10 = vector.load %arg8[%c0_7, %c0_8] : memref<8x128xbf16, #tpu.memory_space<vmem>>, vector<8x128xbf16>
    %11 = arith.extf %10 : vector<8x128xbf16> to vector<8x128xf32>
    %12 = arith.mulf %9, %11 : vector<8x128xf32>
    %c0_9 = arith.constant 0 : index
    %c0_10 = arith.constant 0 : index
    %13 = vector.load %arg5[%c0_9, %c0_10] : memref<8x128xbf16, #tpu.memory_space<vmem>>, vector<8x128xbf16>
    %14 = arith.extf %13 : vector<8x128xbf16> to vector<8x128xf32>
    %15 = arith.mulf %12, %14 : vector<8x128xf32>
    %16 = arith.addf %7, %15 : vector<8x128xf32>
    %c0_11 = arith.constant 0 : index
    %c0_12 = arith.constant 0 : index
    %17 = vector.load %arg3[%c0_11, %c0_12] : memref<8x128xbf16, #tpu.memory_space<vmem>>, vector<8x128xbf16>
    %18 = arith.extf %17 : vector<8x128xbf16> to vector<8x128xf32>
    %c0_13 = arith.constant 0 : index
    %c0_14 = arith.constant 0 : index
    %19 = vector.load %arg9[%c0_13, %c0_14] : memref<8x128xbf16, #tpu.memory_space<vmem>>, vector<8x128xbf16>
    %20 = arith.extf %19 : vector<8x128xbf16> to vector<8x128xf32>
    %21 = arith.mulf %18, %20 : vector<8x128xf32>
    %c0_15 = arith.constant 0 : index
    %c0_16 = arith.constant 0 : index
    %22 = vector.load %arg4[%c0_15, %c0_16] : memref<8x128xbf16, #tpu.memory_space<vmem>>, vector<8x128xbf16>
    %23 = arith.extf %22 : vector<8x128xbf16> to vector<8x128xf32>
    %24 = arith.mulf %21, %23 : vector<8x128xf32>
    %25 = arith.addf %16, %24 : vector<8x128xf32>
    %cst = arith.constant 1.000000e+00 : f32
    %26 = vector.broadcast %cst : f32 to vector<1x128xf32>
    %cst_17 = arith.constant dense<0.000000e+00> : vector<1x8xf32>
    %27 = tpu.matmul %26, %25, %cst_17 {dimension_numbers = #tpu.dot_dimension_numbers<[1], [1], [0], [0], [0, 0, 1, 0], [], []>, precision = #tpu.contract_precision<fp32>} : vector<1x128xf32>, vector<8x128xf32>, vector<1x8xf32> -> vector<1x8xf32>
    %c0_18 = arith.constant 0 : index
    %c0_19 = arith.constant 0 : index
    %c0_20 = arith.constant 0 : index
    %28 = vector.load %arg10[%c0_18, %c0_19, %c0_20] : memref<1x1x8xf32, #tpu.memory_space<vmem>>, vector<1x1x8xf32>
    %29 = vector.shape_cast %28 : vector<1x1x8xf32> to vector<1x8xf32>
    %30 = vector.shape_cast %27 : vector<1x8xf32> to vector<1x1x8xf32>
    tpu.vector_store %arg10[%c0_18, %c0_19, %c0_20], %30 {strides = array<i32>} : memref<1x1x8xf32, #tpu.memory_space<vmem>>, vector<1x1x8xf32>,
    return
  }
  func.func @transform_0(%arg0: i32) -> (i32, i32) {
    %c0_i32 = arith.constant 0 : i32
    %c0_i32_0 = arith.constant 0 : i32
    return %arg0, %c0_i32 : i32, i32
  }
  func.func @transform_1(%arg0: i32) -> (i32, i32) {
    %c0_i32 = arith.constant 0 : i32
    %c0_i32_0 = arith.constant 0 : i32
    return %arg0, %c0_i32 : i32, i32
  }
  func.func @transform_2(%arg0: i32) -> (i32, i32) {
    %c0_i32 = arith.constant 0 : i32
    %c0_i32_0 = arith.constant 0 : i32
    return %arg0, %c0_i32 : i32, i32
  }
  func.func @transform_3(%arg0: i32) -> (i32, i32) {
    %c0_i32 = arith.constant 0 : i32
    %c0_i32_0 = arith.constant 0 : i32
    return %arg0, %c0_i32 : i32, i32
  }
  func.func @transform_4(%arg0: i32) -> (i32, i32) {
    %c0_i32 = arith.constant 0 : i32
    %c0_i32_0 = arith.constant 0 : i32
    return %arg0, %c0_i32 : i32, i32
  }
  func.func @transform_5(%arg0: i32) -> (i32, i32) {
    %c0_i32 = arith.constant 0 : i32
    %c0_i32_0 = arith.constant 0 : i32
    return %arg0, %c0_i32 : i32, i32
  }
  func.func @transform_6(%arg0: i32) -> (i32, i32) {
    %c0_i32 = arith.constant 0 : i32
    %c0_i32_0 = arith.constant 0 : i32
    return %arg0, %c0_i32 : i32, i32
  }
  func.func @transform_7(%arg0: i32) -> (i32, i32) {
    %c0_i32 = arith.constant 0 : i32
    %c0_i32_0 = arith.constant 0 : i32
    return %arg0, %c0_i32 : i32, i32
  }
  func.func @transform_8(%arg0: i32) -> (i32, i32) {
    %c0_i32 = arith.constant 0 : i32
    %c0_i32_0 = arith.constant 0 : i32
    return %arg0, %c0_i32 : i32, i32
  }
  func.func @transform_9(%arg0: i32) -> (i32, i32, i32) {
    %c0_i32 = arith.constant 0 : i32
    %c0_i32_0 = arith.constant 0 : i32
    %c0_i32_1 = arith.constant 0 : i32
    return %arg0, %c0_i32, %c0_i32_0 : i32, i32, i32
  }
}

</mosaic_0001>

<llo_original>
// kernel: forward.1
$region0: #{forward.1}
  #allocation0 [shape = 'u32[]', space=smem, size = 0x4, offset = 0x4, fixed_abs, tag = 'smem constant byte address 0x4 - core index']
  #allocation1 [shape = 'u32[72,128]{1,0:T(1,128)}', space=vmem, size = 0x9000, scoped, tag = 'internal scratch']
  %s0 = inlined_call_operand.vmem [shape: bf16[8,128], index: 0, kind: input, shape index: {}]
  %s1 = inlined_call_operand.vmem [shape: bf16[8,128], index: 1, kind: input, shape index: {}]
  %s2 = inlined_call_operand.vmem [shape: bf16[8,128], index: 2, kind: input, shape index: {}]
  %s3 = inlined_call_operand.vmem [shape: bf16[8,128], index: 3, kind: input, shape index: {}]
  %s4 = inlined_call_operand.vmem [shape: bf16[8,128], index: 4, kind: input, shape index: {}]
  %s5 = inlined_call_operand.vmem [shape: bf16[8,128], index: 5, kind: input, shape index: {}]
  %s6 = inlined_call_operand.vmem [shape: bf16[8,128], index: 6, kind: input, shape index: {}]
  %s7 = inlined_call_operand.vmem [shape: bf16[8,128], index: 7, kind: input, shape index: {}]
  %s8 = inlined_call_operand.vmem [shape: bf16[8,128], index: 8, kind: input, shape index: {}]
  %s9 = inlined_call_operand.hbm [shape: f32[1,1,8], index: 9, kind: output, shape index: {}]
  %s10 = sld [smem:[#allocation0]]
  $region46: #{forward.1} parent=0
    _
  %s12 = ssub.s32 1, %s10
  %s13 = scalar_select 0, %s12, %s10
  $region1: #{forward.1} parent=0
    #allocation2 [shape = 'u8[512]{0}', space=vmem, size = 0x400, scoped, tag = 'output window, operand 0, single buffered']
    #allocation3 [shape = 's32[1]{0}', space=sflag, size = 0x4, scoped, tag = 'scoped memory for forward.1']
    %14 = vsyncpa [#allocation3], 0
    // Predicated region
    $region2: #{forward.1} parent=1 // pred_check
      _
    $region3: #{forward.1} parent=1 // pred_check_branch
      %16 = sbr.rel (0) target = $region5
    $region4: #{forward.1} parent=1 // pred_region
      _
    $region5: #{forward.1} parent=1 // pred_fallthru
      _
    // Predicated region
    $region6: #{forward.1} parent=1 // pred_check
      _
    $region7: #{forward.1} parent=1 // pred_check_branch
      %18 = sbr.rel (0) target = $region9
    $region8: #{forward.1} parent=1 // pred_region
      _
    $region9: #{forward.1} parent=1 // pred_fallthru
      _
    // Predicated region
    $region10: #{forward.1} parent=1 // pred_check
      _
    $region11: #{forward.1} parent=1 // pred_check_branch
      %20 = sbr.rel (0) target = $region13
    $region12: #{forward.1} parent=1 // pred_region
      _
    $region13: #{forward.1} parent=1 // pred_fallthru
      _
    // Predicated region
    $region14: #{forward.1} parent=1 // pred_check
      _
    $region15: #{forward.1} parent=1 // pred_check_branch
      %22 = sbr.rel (0) target = $region17
    $region16: #{forward.1} parent=1 // pred_region
      _
    $region17: #{forward.1} parent=1 // pred_fallthru
      _
    // Predicated region
    $region18: #{forward.1} parent=1 // pred_check
      _
    $region19: #{forward.1} parent=1 // pred_check_branch
      %24 = sbr.rel (0) target = $region21
    $region20: #{forward.1} parent=1 // pred_region
      _
    $region21: #{forward.1} parent=1 // pred_fallthru
      _
    // Predicated region
    $region22: #{forward.1} parent=1 // pred_check
      _
    $region23: #{forward.1} parent=1 // pred_check_branch
      %26 = sbr.rel (0) target = $region25
    $region24: #{forward.1} parent=1 // pred_region
      _
    $region25: #{forward.1} parent=1 // pred_fallthru
      _
    // Predicated region
    $region26: #{forward.1} parent=1 // pred_check
      _
    $region27: #{forward.1} parent=1 // pred_check_branch
      %28 = sbr.rel (0) target = $region29
    $region28: #{forward.1} parent=1 // pred_region
      _
    $region29: #{forward.1} parent=1 // pred_fallthru
      _
    // Predicated region
    $region30: #{forward.1} parent=1 // pred_check
      _
    $region31: #{forward.1} parent=1 // pred_check_branch
      %30 = sbr.rel (0) target = $region33
    $region32: #{forward.1} parent=1 // pred_region
      _
    $region33: #{forward.1} parent=1 // pred_fallthru
      _
    // Predicated region
    $region34: #{forward.1} parent=1 // pred_check
      _
    $region35: #{forward.1} parent=1 // pred_check_branch
      %32 = sbr.rel (0) target = $region37
    $region36: #{forward.1} parent=1 // pred_region
      _
    $region37: #{forward.1} parent=1 // pred_fallthru
      _
    %v33 = vld [vmem:[%s0] sm:$0xf]
    %v34 = vunpack.c.l.bf16 %v33
    %v35 = vld [vmem:[%s6] sm:$0xf]
    %v36 = vunpack.c.l.bf16 %v35
    %v37 = vmul.f32 %v34, %v36
    %v38 = vld [vmem:[%s5] sm:$0xf]
    %v39 = vunpack.c.l.bf16 %v38
    %v40 = vmul.f32 %v37, %v39
    %v41 = vld [vmem:[%s1] sm:$0xf]
    %v42 = vunpack.c.l.bf16 %v41
    %v43 = vld [vmem:[%s7] sm:$0xf]
    %v44 = vunpack.c.l.bf16 %v43
    %v45 = vmul.f32 %v42, %v44
    %v46 = vld [vmem:[%s4] sm:$0xf]
    %v47 = vunpack.c.l.bf16 %v46
    %v48 = vmul.f32 %v45, %v47
    %v49 = vadd.f32 %v40, %v48
    %v50 = vld [vmem:[%s2] sm:$0xf]
    %v51 = vunpack.c.l.bf16 %v50
    %v52 = vld [vmem:[%s8] sm:$0xf]
    %v53 = vunpack.c.l.bf16 %v52
    %v54 = vmul.f32 %v51, %v53
    %v55 = vld [vmem:[%s3] sm:$0xf]
    %v56 = vunpack.c.l.bf16 %v55
    %v57 = vmul.f32 %v54, %v56
    %v58 = vadd.f32 %v49, %v57
    %59 = vmatpush.xpose.msra.mxu0 0.0
    %60 = vmatpush.xpose.msra.mxu0 0.0
    %61 = vmatpush.xpose.msra.mxu0 0.0
    %62 = vmatpush.xpose.msra.mxu0 0.0
    %63 = vmatpush.xpose.msra.mxu0 0.0
    %64 = vmatpush.xpose.msra.mxu0 0.0
    %65 = vmatpush.xpose.msra.mxu0 0.0
    %66 = vmatpush.xpose.msra.mxu0 0.0
    %67 = vmatpush.xpose.msra.mxu0 0.0
    %68 = vmatpush.xpose.msra.mxu0 0.0
    %69 = vmatpush.xpose.msra.mxu0 0.0
    %70 = vmatpush.xpose.msra.mxu0 0.0
    %71 = vmatpush.xpose.msra.mxu0 0.0
    %72 = vmatpush.xpose.msra.mxu0 0.0
    %73 = vmatpush.xpose.msra.mxu0 0.0
    %v74 = vand.u32 %v58, 4294901760
    %75 = vmatpush.xpose.msra.mxu0 %v74
    %76 = vmatmul.f32.gmra.mxu0 0.0
    %v77 = vpop.f32.mrf.mxu0
    %v78 = vadd.f32 0.0, %v77
    %79 = vdwg.mxu0
    %80 = vmatpush.xpose.msra.mxu0 0.0
    %81 = vmatpush.xpose.msra.mxu0 0.0
    %82 = vmatpush.xpose.msra.mxu0 0.0
    %83 = vmatpush.xpose.msra.mxu0 0.0
    %84 = vmatpush.xpose.msra.mxu0 0.0
    %85 = vmatpush.xpose.msra.mxu0 0.0
    %86 = vmatpush.xpose.msra.mxu0 0.0
    %87 = vmatpush.xpose.msra.mxu0 0.0
    %88 = vmatpush.xpose.msra.mxu0 0.0
    %89 = vmatpush.xpose.msra.mxu0 0.0
    %90 = vmatpush.xpose.msra.mxu0 0.0
    %91 = vmatpush.xpose.msra.mxu0 0.0
    %92 = vmatpush.xpose.msra.mxu0 0.0
    %93 = vmatpush.xpose.msra.mxu0 0.0
    %94 = vmatpush.xpose.msra.mxu0 0.0
    %v95 = vand.u32 %v58, 4294901760
    %v96 = vsub.f32 %v58, %v95
    %v97 = vand.u32 %v96, 4294901760
    %v98 = vsub.f32 %v96, %v97
    %v99 = vand.u32 %v98, 4294901760
    %100 = vmatpush.xpose.msra.mxu0 %v99
    %101 = vmatmul.f32.gmra.mxu0 1.0
    %v102 = vpop.f32.mrf.mxu0
    %v103 = vadd.f32 %v78, %v102
    %104 = vdwg.mxu0
    %105 = vmatpush.xpose.msra.mxu0 0.0
    %106 = vmatpush.xpose.msra.mxu0 0.0
    %107 = vmatpush.xpose.msra.mxu0 0.0
    %108 = vmatpush.xpose.msra.mxu0 0.0
    %109 = vmatpush.xpose.msra.mxu0 0.0
    %110 = vmatpush.xpose.msra.mxu0 0.0
    %111 = vmatpush.xpose.msra.mxu0 0.0
    %112 = vmatpush.xpose.msra.mxu0 0.0
    %113 = vmatpush.xpose.msra.mxu0 0.0
    %114 = vmatpush.xpose.msra.mxu0 0.0
    %115 = vmatpush.xpose.msra.mxu0 0.0
    %116 = vmatpush.xpose.msra.mxu0 0.0
    %117 = vmatpush.xpose.msra.mxu0 0.0
    %118 = vmatpush.xpose.msra.mxu0 0.0
    %119 = vmatpush.xpose.msra.mxu0 0.0
    %v120 = vand.u32 %v58, 4294901760
    %v121 = vsub.f32 %v58, %v120
    %122 = vmatpush.xpose.msra.mxu0 %v121
    %123 = vmatmul.f32.gmra.mxu0 0.0
    %v124 = vpop.f32.mrf.mxu0
    %v125 = vadd.f32 %v103, %v124
    %126 = vdwg.mxu0
    %127 = vmatpush.xpose.msra.mxu0 0.0
    %128 = vmatpush.xpose.msra.mxu0 0.0
    %129 = vmatpush.xpose.msra.mxu0 0.0
    %130 = vmatpush.xpose.msra.mxu0 0.0
    %131 = vmatpush.xpose.msra.mxu0 0.0
    %132 = vmatpush.xpose.msra.mxu0 0.0
    %133 = vmatpush.xpose.msra.mxu0 0.0
    %134 = vmatpush.xpose.msra.mxu0 0.0
    %135 = vmatpush.xpose.msra.mxu0 0.0
    %136 = vmatpush.xpose.msra.mxu0 0.0
    %137 = vmatpush.xpose.msra.mxu0 0.0
    %138 = vmatpush.xpose.msra.mxu0 0.0
    %139 = vmatpush.xpose.msra.mxu0 0.0
    %140 = vmatpush.xpose.msra.mxu0 0.0
    %141 = vmatpush.xpose.msra.mxu0 0.0
    %v142 = vand.u32 %v58, 4294901760
    %143 = vmatpush.xpose.msra.mxu0 %v142
    %144 = vmatmul.f32.gmra.mxu0 0.0
    %v145 = vpop.f32.mrf.mxu0
    %v146 = vadd.f32 %v125, %v145
    %147 = vdwg.mxu0
    %148 = vmatpush.xpose.msra.mxu0 0.0
    %149 = vmatpush.xpose.msra.mxu0 0.0
    %150 = vmatpush.xpose.msra.mxu0 0.0
    %151 = vmatpush.xpose.msra.mxu0 0.0
    %152 = vmatpush.xpose.msra.mxu0 0.0
    %153 = vmatpush.xpose.msra.mxu0 0.0
    %154 = vmatpush.xpose.msra.mxu0 0.0
    %155 = vmatpush.xpose.msra.mxu0 0.0
    %156 = vmatpush.xpose.msra.mxu0 0.0
    %157 = vmatpush.xpose.msra.mxu0 0.0
    %158 = vmatpush.xpose.msra.mxu0 0.0
    %159 = vmatpush.xpose.msra.mxu0 0.0
    %160 = vmatpush.xpose.msra.mxu0 0.0
    %161 = vmatpush.xpose.msra.mxu0 0.0
    %162 = vmatpush.xpose.msra.mxu0 0.0
    %v163 = vand.u32 %v58, 4294901760
    %v164 = vsub.f32 %v58, %v163
    %v165 = vand.u32 %v164, 4294901760
    %166 = vmatpush.xpose.msra.mxu0 %v165
    %167 = vmatmul.f32.gmra.mxu0 1.0
    %v168 = vpop.f32.mrf.mxu0
    %v169 = vadd.f32 %v146, %v168
    %170 = vdwg.mxu0
    %171 = vmatpush.xpose.msra.mxu0 0.0
    %172 = vmatpush.xpose.msra.mxu0 0.0
    %173 = vmatpush.xpose.msra.mxu0 0.0
    %174 = vmatpush.xpose.msra.mxu0 0.0
    %175 = vmatpush.xpose.msra.mxu0 0.0
    %176 = vmatpush.xpose.msra.mxu0 0.0
    %177 = vmatpush.xpose.msra.mxu0 0.0
    %178 = vmatpush.xpose.msra.mxu0 0.0
    %179 = vmatpush.xpose.msra.mxu0 0.0
    %180 = vmatpush.xpose.msra.mxu0 0.0
    %181 = vmatpush.xpose.msra.mxu0 0.0
    %182 = vmatpush.xpose.msra.mxu0 0.0
    %183 = vmatpush.xpose.msra.mxu0 0.0
    %184 = vmatpush.xpose.msra.mxu0 0.0
    %185 = vmatpush.xpose.msra.mxu0 0.0
    %v186 = vand.u32 %v58, 4294901760
    %187 = vmatpush.xpose.msra.mxu0 %v186
    %188 = vmatmul.f32.gmra.mxu0 1.0
    %v189 = vpop.f32.mrf.mxu0
    %v190 = vadd.f32 %v169, %v189
    %191 = vdwg.mxu0
    %vm192 = vcmask 57344
    %193 = vst.msk [vmem:[#allocation2] sm:$0x1] %vm192, %v190
    // Predicated region
    $region38: #{forward.1} parent=1 // pred_check
      _
    $region39: #{forward.1} parent=1 // pred_check_branch
      %195 = sbr.rel (0) target = $region41
    $region40: #{forward.1} parent=1 // pred_region
      %197 = vsyncadd [#allocation3], 0
      %s199 = sshll.u32 [#allocation2], 4
      %s200 = int_to_ptr.vmem [resolvable:$true] %s199
      %s201 = sshll.u32 %s9, 4
      %s202 = int_to_ptr.hbm [resolvable:$true] %s201
      %204 = dma.vmem_to_hbm [thread:$0]  %s200, 16, %s202, [#allocation3]
    $region41: #{forward.1} parent=1 // pred_fallthru
      _
    // Predicated region
    $region42: #{forward.1} parent=1 // pred_check
      _
    $region43: #{forward.1} parent=1 // pred_check_branch
      %206 = sbr.rel (0) target = $region45
    $region44: #{forward.1} parent=1 // pred_region
      %208 = dma.done [#allocation3], 16
    $region45: #{forward.1} parent=1 // pred_fallthru
      _
    %209 = vsyncpa [#allocation3], 1

</llo_original>
